<compile_context>
chip_gen: v5e
topology: v5e:2x2
jax: 0.10.0
libtpu: 0.0.40
codegen_flags: <defaults>
</compile_context>

<pallas_src>
import math

import jax
import jax.numpy as jnp
from jax.experimental import pallas as pl
from jax.experimental.pallas import tpu as pltpu

WINDOW_SIZE = 11
SSIM_C1 = 0.01 ** 2
SSIM_C2 = 0.03 ** 2
SMOOTH_NR = 1e-5   # monai DiceLoss defaults
SMOOTH_DR = 1e-5
CONSISTENCY = 0.1
CONSISTENCY_RAMPUP = 200.0


# ---------------------------------------------------------------------------
# Gaussian window -> "core" separable conv matrices (plain JAX, trace-time setup)
# ---------------------------------------------------------------------------
def _gaussian_1d(window_size, sigma):
    xs = jnp.arange(window_size, dtype=jnp.float32)
    g = jnp.exp(-((xs - window_size // 2) ** 2) / (2.0 * sigma ** 2))
    return g / jnp.sum(g)


def _conv_core_matrices(h, w, window_size):
    """A (H,H) and B (W,W) such that A @ X @ B == F.conv2d(X, outer(g,g), padding=p)
    for an (H,W) image (zero 'same' padding folded into the truncated band matrices)."""
    g = _gaussian_1d(window_size, 1.5)
    pad = window_size // 2
    dy = jnp.arange(h)[None, :] - jnp.arange(h)[:, None] + pad      # (H_out, H_in)
    a = jnp.where((dy >= 0) & (dy < window_size),
                  g[jnp.clip(dy, 0, window_size - 1)], 0.0)
    dx = jnp.arange(w)[:, None] - jnp.arange(w)[None, :] + pad      # (W_in, W_out)
    b = jnp.where((dx >= 0) & (dx < window_size),
                  g[jnp.clip(dx, 0, window_size - 1)], 0.0)
    return a.astype(jnp.float32), b.astype(jnp.float32)


# ---------------------------------------------------------------------------
# SSIM kernel: TILE images per grid step, lane-folded layout (H, TILE*W)
# ---------------------------------------------------------------------------
def _make_ssim_kernel(t, w, h, n_valid, need_mask):
    tw = t * w

    def kernel(x1_ref, x2_ref, at_ref, bb_ref, o_ref):
        x1 = x1_ref[...]          # (H, TW) : TILE images side by side on lanes
        x2 = x2_ref[...]
        at = at_ref[...]          # (H, H)   row-conv matrix (constant index -> resident)
        bb = bb_ref[...]          # (TW, TW) block-diag kron(I_T, B) col conv (resident)

        def conv(x):              # separable Gaussian "same" conv for all T images at once
            y = jnp.dot(at, x, preferred_element_type=jnp.float32)    # (H, TW)
            return jnp.dot(y, bb, preferred_element_type=jnp.float32)  # (H, TW)

        mu1 = conv(x1)
        mu2 = conv(x2)
        e11 = conv(x1 * x1)
        e22 = conv(x2 * x2)
        e12 = conv(x1 * x2)

        mu1_sq = mu1 * mu1
        mu2_sq = mu2 * mu2
        mu1_mu2 = mu1 * mu2
        sigma1_sq = e11 - mu1_sq
        sigma2_sq = e22 - mu2_sq
        sigma12 = e12 - mu1_mu2

        num = (2.0 * mu1_mu2 + SSIM_C1) * (2.0 * sigma12 + SSIM_C2)
        # NOTE: denominator parenthesization reproduced exactly as in the reference code.
        den = (mu1_sq + mu2_sq + SSIM_C1) * sigma1_sq + sigma2_sq + SSIM_C2
        ssim_map = num * pl.reciprocal(den, approx=True)               # divide on EUP

        if need_mask:
            # Zero out lanes belonging to zero-padded (invalid) images.
            col = jax.lax.broadcasted_iota(jnp.int32, (h, tw), 1)
            img = pl.program_id(0) * t + col // w
            ssim_map = jnp.where(img < n_valid, ssim_map, 0.0)

        s = jnp.sum(ssim_map, axis=(0, 1), keepdims=True)              # (1, 1)
        row = jax.lax.broadcasted_iota(jnp.int32, (8, 128), 0)
        lane = jax.lax.broadcasted_iota(jnp.int32, (8, 128), 1)
        o_ref[...] = jnp.where((row == 0) & (lane == 0), s, 0.0)       # lane-dense store

    return kernel


def _pick_ssim_tile(n, w, max_lanes=512, max_bbig_bytes=4 << 20):
    """Images per grid step: fill ~max_lanes lanes, keep kron(I_t, B) small,
    keep the block lane dim a multiple of 128 (or equal to the full array)."""
    if n * w <= max_lanes:
        return n                                   # single step, block == full array
    m = 128 // math.gcd(w, 128)                    # smallest t with (t*w) % 128 == 0
    t = max(m, (max_lanes // max(w, 1)) // m * m)
    while t > m and (t * w) * (t * w) * 4 > max_bbig_bytes:
        t -= m
    if (t * w) % 128 != 0:
        return n                                   # fallback: one full-array step
    if (t * w) * (t * w) * 4 > max_bbig_bytes:
        return min(m, n)                           # smallest lane-aligned tile
    return min(t, n)


def _ssim_mean(x1, x2, window_size=WINDOW_SIZE):
    """Mean of the SSIM map over a stack of (N, H, W) single-channel images."""
    n, h, w = x1.shape
    at, bm = _conv_core_matrices(h, w, window_size)

    t = _pick_ssim_tile(n, w)
    n_pad = ((n + t - 1) // t) * t
    g = n_pad // t
    tw = t * w

    x1 = x1.astype(jnp.float32)
    x2 = x2.astype(jnp.float32)
    if n_pad != n:
        zpad = jnp.zeros((n_pad - n, h, w), jnp.float32)
        x1 = jnp.concatenate([x1, zpad], axis=0)
        x2 = jnp.concatenate([x2, zpad], axis=0)

    # Lane-fold: (N, H, W) -> (H, N*W) so each grid step sees a lane-dense slab.
    x1f = jnp.transpose(x1, (1, 0, 2)).reshape(h, n_pad * w)
    x2f = jnp.transpose(x2, (1, 0, 2)).reshape(h, n_pad * w)

    bbig = jnp.kron(jnp.eye(t, dtype=jnp.float32), bm)      # (TW, TW) block-diag col conv

    out = pl.pallas_call(
        _make_ssim_kernel(t=t, w=w, h=h, n_valid=n, need_mask=(n_pad != n)),
        out_shape=jax.ShapeDtypeStruct((g * 8, 128), jnp.float32),
        grid=(g,),
        in_specs=[
            pl.BlockSpec((h, tw), lambda i: (0, i)),
            pl.BlockSpec((h, tw), lambda i: (0, i)),
            pl.BlockSpec((h, h), lambda i: (0, 0)),      # constant index -> not re-DMA'd
            pl.BlockSpec((tw, tw), lambda i: (0, 0)),    # constant index -> not re-DMA'd
        ],
        out_specs=pl.BlockSpec((8, 128), lambda i: (i, 0)),
        compiler_params=pltpu.CompilerParams(dimension_semantics=("parallel",)),
    )(x1f, x2f, at, bbig)

    return jnp.sum(out) / (n * h * w)


def ssim_pallas(img1, img2, window_size=WINDOW_SIZE):
    """ssim(img1, img2, window_size, size_average=True) for NCHW inputs."""
    b, c, h, w = img1.shape
    return _ssim_mean(img1.reshape(b * c, h, w), img2.reshape(b * c, h, w), window_size)


def loss_ssim_pallas(img1, img2, window_size=WINDOW_SIZE):
    return 1.0 - ssim_pallas(img1, img2, window_size)


# ---------------------------------------------------------------------------
# monai DiceLoss(include_background=False): tiled HW reduction, channel 0 skipped
# via the index_map (no wrapper-side slice copy).
# ---------------------------------------------------------------------------
def _dice_kernel(p_ref, t_ref, o_ref, acc_i, acc_p, acc_g):
    j = pl.program_id(2)

    @pl.when(j == 0)
    def _():
        acc_i[...] = jnp.zeros_like(acc_i)
        acc_p[...] = jnp.zeros_like(acc_p)
        acc_g[...] = jnp.zeros_like(acc_g)

    p = p_ref[0]                       # (TILE_H, W)
    t = t_ref[0]
    acc_i[...] += jnp.sum(p * t, axis=(0, 1), keepdims=True)
    acc_p[...] += jnp.sum(p, axis=(0, 1), keepdims=True)
    acc_g[...] += jnp.sum(t, axis=(0, 1), keepdims=True)

    @pl.when(j == pl.num_programs(2) - 1)
    def _():
        f = 1.0 - (2.0 * acc_i[...] + SMOOTH_NR) / (acc_g[...] + acc_p[...] + SMOOTH_DR)
        row = jax.lax.broadcasted_iota(jnp.int32, (8, 128), 0)
        lane = jax.lax.broadcasted_iota(jnp.int32, (8, 128), 1)
        o_ref[...] = jnp.where((row == 0) & (lane == 0), f, 0.0)


def _pick_dice_tile_h(h, w, max_elems=1 << 18):
    """Largest multiple-of-8 divisor of H with TILE_H*W <= max_elems (else H)."""
    if h * w <= max_elems:
        return h
    best = None
    th = 8
    while th < h:
        if h % th == 0 and th * w <= max_elems:
            best = th
        th += 8
    return best if best is not None else h


def dice_loss_pallas(pred, target):
    b, c, h, w = pred.shape
    nc = c - 1                                     # include_background=False
    p3 = pred.astype(jnp.float32).reshape(b * c, h, w)     # free reshape (no copy)
    t3 = target.astype(jnp.float32).reshape(b * c, h, w)

    tile_h = _pick_dice_tile_h(h, w)
    nj = h // tile_h

    out = pl.pallas_call(
        _dice_kernel,
        out_shape=jax.ShapeDtypeStruct((b * nc * 8, 128), jnp.float32),
        grid=(b, nc, nj),
        in_specs=[
            pl.BlockSpec((1, tile_h, w), lambda bi, ci, j: (bi * c + ci + 1, j, 0)),
            pl.BlockSpec((1, tile_h, w), lambda bi, ci, j: (bi * c + ci + 1, j, 0)),
        ],
        out_specs=pl.BlockSpec((8, 128), lambda bi, ci, j: (bi * nc + ci, 0)),
        scratch_shapes=[pltpu.VMEM((1, 1), jnp.float32),
                        pltpu.VMEM((1, 1), jnp.float32),
                        pltpu.VMEM((1, 1), jnp.float32)],
        compiler_params=pltpu.CompilerParams(
            dimension_semantics=("parallel", "parallel", "arbitrary")),
    )(p3, t3)

    return jnp.sum(out) / (b * nc)                 # mean reduction over (batch, fg channels)


# ---------------------------------------------------------------------------
# SATLoss forward
# ---------------------------------------------------------------------------
def get_current_consistency_weight(epoch):
    # TODO(synk): get_current_consistency_weight is not defined in the reference snippet;
    # using the standard mean-teacher sigmoid rampup (consistency=0.1, rampup=200).
    phase = 1.0 - jnp.clip(epoch / CONSISTENCY_RAMPUP, 0.0, 1.0)
    return CONSISTENCY * jnp.exp(-5.0 * phase * phase)


def sat_loss(final_pred, target, slice_prop, epoch):
    """pred = (final_pred, slice_prop); slice_prop is a list of (mid_slice, false_gt) pairs."""
    dice = dice_loss_pallas(final_pred, target)

    mids = [p[0][:, None] if p[0].ndim == 3 else p[0] for p in slice_prop]
    fgts = [p[1][:, None] if p[1].ndim == 3 else p[1] for p in slice_prop]
    k = len(fgts)

    shapes = {m.shape for m in mids} | {f.shape for f in fgts}
    if len(shapes) == 1:
        # All pairs share a shape: fuse the whole slice_prop loop into ONE SSIM launch.
        # mean over the concatenation == average of per-pair means (equal element counts).
        h, w = mids[0].shape[-2], mids[0].shape[-1]
        m_all = jnp.concatenate([m.reshape(-1, h, w) for m in mids], axis=0)
        f_all = jnp.concatenate([f.reshape(-1, h, w) for f in fgts], axis=0)
        aux = 1.0 - _ssim_mean(m_all, f_all, WINDOW_SIZE)
    else:
        aux = sum(loss_ssim_pallas(mids[i], fgts[i], WINDOW_SIZE) for i in range(k)) / k

    return dice + get_current_consistency_weight(epoch) * aux


# ---------------------------------------------------------------------------
# Demo
# ---------------------------------------------------------------------------
if __name__ == "__main__":
    key = jax.random.PRNGKey(0)
    B, C, H, W = 2, 3, 16, 16
    k1, k2, k3, k4, k5, k6 = jax.random.split(key, 6)

    # final prediction (softmax probabilities over channels) and one-hot target
    final_pred = jax.nn.softmax(jax.random.normal(k1, (B, C, H, W), jnp.float32), axis=1)
    target_idx = jax.random.randint(k2, (B, H, W), 0, C)
    target = jax.nn.one_hot(target_idx, C, axis=1, dtype=jnp.float32)       # (B, C, H, W)

    # slice_prop: two (mid_slice, false_gt) pairs of 3-D (B, H, W) maps in [0, 1]
    slice_prop = [
        (jax.nn.sigmoid(jax.random.normal(k3, (B, H, W), jnp.float32)),
         jax.nn.sigmoid(jax.random.normal(k4, (B, H, W), jnp.float32))),
        (jax.nn.sigmoid(jax.random.normal(k5, (B, H, W), jnp.float32)),
         jax.nn.sigmoid(jax.random.normal(k6, (B, H, W), jnp.float32))),
    ]

    epoch = 10
    loss = sat_loss(final_pred, target, slice_prop, epoch)
    jax.block_until_ready(loss)
    print("KERNEL_OK")
</pallas_src>

<mosaic_0001>
module attributes {stable_mosaic.version = 11 : i64} {
  func.func @_dice_kernel(%arg0: i32, %arg1: i32, %arg2: i32, %arg3: memref<1x16x16xf32, #tpu.memory_space<vmem>>, %arg4: memref<1x16x16xf32, #tpu.memory_space<vmem>>, %arg5: memref<8x128xf32, #tpu.memory_space<vmem>>, %arg6: memref<1x1xf32, #tpu.memory_space<vmem>>, %arg7: memref<1x1xf32, #tpu.memory_space<vmem>>, %arg8: memref<1x1xf32, #tpu.memory_space<vmem>>) attributes {dimension_semantics = [#tpu.dimension_semantics<parallel>, #tpu.dimension_semantics<parallel>, #tpu.dimension_semantics<arbitrary>], iteration_bounds = array<i64: 2, 2, 1>, scalar_prefetch = 0 : i64, scratch_operands = 3 : i64, tpu.core_type = #tpu.core_type<tc>, window_params = [{transform_indices = @transform_0, window_bounds = array<i64: 1, 16, 16>}, {transform_indices = @transform_1, window_bounds = array<i64: 1, 16, 16>}, {transform_indices = @transform_2, window_bounds = array<i64: 8, 128>}]} {
    %c0_i32 = arith.constant 0 : i32
    %0 = arith.cmpi eq, %arg2, %c0_i32 : i32
    %1 = arith.extui %0 : i1 to i32
    %c0_i32_0 = arith.constant 0 : i32
    %2 = arith.cmpi ne, %1, %c0_i32_0 : i32
    scf.if %2 {
      %cst_22 = arith.constant 0.000000e+00 : f32
      %35 = vector.broadcast %cst_22 : f32 to vector<1x1xf32>
      %c0_23 = arith.constant 0 : index
      %c0_24 = arith.constant 0 : index
      %36 = vector.load %arg6[%c0_23, %c0_24] : memref<1x1xf32, #tpu.memory_space<vmem>>, vector<1x1xf32>
      tpu.vector_store %arg6[%c0_23, %c0_24], %35 {strides = array<i32>} : memref<1x1xf32, #tpu.memory_space<vmem>>, vector<1x1xf32>,
      %cst_25 = arith.constant 0.000000e+00 : f32
      %37 = vector.broadcast %cst_25 : f32 to vector<1x1xf32>
      %c0_26 = arith.constant 0 : index
      %c0_27 = arith.constant 0 : index
      %38 = vector.load %arg7[%c0_26, %c0_27] : memref<1x1xf32, #tpu.memory_space<vmem>>, vector<1x1xf32>
      tpu.vector_store %arg7[%c0_26, %c0_27], %37 {strides = array<i32>} : memref<1x1xf32, #tpu.memory_space<vmem>>, vector<1x1xf32>,
      %cst_28 = arith.constant 0.000000e+00 : f32
      %39 = vector.broadcast %cst_28 : f32 to vector<1x1xf32>
      %c0_29 = arith.constant 0 : index
      %c0_30 = arith.constant 0 : index
      %40 = vector.load %arg8[%c0_29, %c0_30] : memref<1x1xf32, #tpu.memory_space<vmem>>, vector<1x1xf32>
      tpu.vector_store %arg8[%c0_29, %c0_30], %39 {strides = array<i32>} : memref<1x1xf32, #tpu.memory_space<vmem>>, vector<1x1xf32>,
    } else {
    }
    %c0 = arith.constant 0 : index
    %c0_1 = arith.constant 0 : index
    %c0_2 = arith.constant 0 : index
    %3 = vector.load %arg3[%c0, %c0_1, %c0_2] : memref<1x16x16xf32, #tpu.memory_space<vmem>>, vector<1x16x16xf32>
    %4 = vector.shape_cast %3 : vector<1x16x16xf32> to vector<16x16xf32>
    %c0_3 = arith.constant 0 : index
    %c0_4 = arith.constant 0 : index
    %c0_5 = arith.constant 0 : index
    %5 = vector.load %arg4[%c0_3, %c0_4, %c0_5] : memref<1x16x16xf32, #tpu.memory_space<vmem>>, vector<1x16x16xf32>
    %6 = vector.shape_cast %5 : vector<1x16x16xf32> to vector<16x16xf32>
    %c0_6 = arith.constant 0 : index
    %c0_7 = arith.constant 0 : index
    %7 = vector.load %arg6[%c0_6, %c0_7] : memref<1x1xf32, #tpu.memory_space<vmem>>, vector<1x1xf32>
    %8 = arith.mulf %4, %6 : vector<16x16xf32>
    %9 = vector.shape_cast %8 : vector<16x16xf32> to vector<1x16x16xf32>
    %cst = arith.constant dense<0.000000e+00> : vector<1xf32>
    %10 = vector.multi_reduction <add>, %9, %cst [1, 2] : vector<1x16x16xf32> to vector<1xf32>
    %11 = vector.shape_cast %10 : vector<1xf32> to vector<1x1x1xf32>
    %12 = vector.extract %11[0, 0, 0] : f32 from vector<1x1x1xf32>
    %13 = vector.broadcast %12 : f32 to vector<1x1xf32>
    %14 = arith.addf %7, %13 : vector<1x1xf32>
    %c0_8 = arith.constant 0 : index
    %c0_9 = arith.constant 0 : index
    %15 = vector.load %arg6[%c0_8, %c0_9] : memref<1x1xf32, #tpu.memory_space<vmem>>, vector<1x1xf32>
    tpu.vector_store %arg6[%c0_8, %c0_9], %14 {strides = array<i32>} : memref<1x1xf32, #tpu.memory_space<vmem>>, vector<1x1xf32>,
    %c0_10 = arith.constant 0 : index
    %c0_11 = arith.constant 0 : index
    %16 = vector.load %arg7[%c0_10, %c0_11] : memref<1x1xf32, #tpu.memory_space<vmem>>, vector<1x1xf32>
    %17 = vector.shape_cast %4 : vector<16x16xf32> to vector<1x16x16xf32>
    %cst_12 = arith.constant dense<0.000000e+00> : vector<1xf32>
    %18 = vector.multi_reduction <add>, %17, %cst_12 [1, 2] : vector<1x16x16xf32> to vector<1xf32>
    %19 = vector.shape_cast %18 : vector<1xf32> to vector<1x1x1xf32>
    %20 = vector.extract %19[0, 0, 0] : f32 from vector<1x1x1xf32>
    %21 = vector.broadcast %20 : f32 to vector<1x1xf32>
    %22 = arith.addf %16, %21 : vector<1x1xf32>
    %c0_13 = arith.constant 0 : index
    %c0_14 = arith.constant 0 : index
    %23 = vector.load %arg7[%c0_13, %c0_14] : memref<1x1xf32, #tpu.memory_space<vmem>>, vector<1x1xf32>
    tpu.vector_store %arg7[%c0_13, %c0_14], %22 {strides = array<i32>} : memref<1x1xf32, #tpu.memory_space<vmem>>, vector<1x1xf32>,
    %c0_15 = arith.constant 0 : index
    %c0_16 = arith.constant 0 : index
    %24 = vector.load %arg8[%c0_15, %c0_16] : memref<1x1xf32, #tpu.memory_space<vmem>>, vector<1x1xf32>
    %25 = vector.shape_cast %6 : vector<16x16xf32> to vector<1x16x16xf32>
    %cst_17 = arith.constant dense<0.000000e+00> : vector<1xf32>
    %26 = vector.multi_reduction <add>, %25, %cst_17 [1, 2] : vector<1x16x16xf32> to vector<1xf32>
    %27 = vector.shape_cast %26 : vector<1xf32> to vector<1x1x1xf32>
    %28 = vector.extract %27[0, 0, 0] : f32 from vector<1x1x1xf32>
    %29 = vector.broadcast %28 : f32 to vector<1x1xf32>
    %30 = arith.addf %24, %29 : vector<1x1xf32>
    %c0_18 = arith.constant 0 : index
    %c0_19 = arith.constant 0 : index
    %31 = vector.load %arg8[%c0_18, %c0_19] : memref<1x1xf32, #tpu.memory_space<vmem>>, vector<1x1xf32>
    tpu.vector_store %arg8[%c0_18, %c0_19], %30 {strides = array<i32>} : memref<1x1xf32, #tpu.memory_space<vmem>>, vector<1x1xf32>,
    %c0_i32_20 = arith.constant 0 : i32
    %32 = arith.cmpi eq, %arg2, %c0_i32_20 : i32
    %33 = arith.extui %32 : i1 to i32
    %c0_i32_21 = arith.constant 0 : i32
    %34 = arith.cmpi ne, %33, %c0_i32_21 : i32
    scf.if %34 {
      %c0_22 = arith.constant 0 : index
      %c0_23 = arith.constant 0 : index
      %35 = vector.load %arg6[%c0_22, %c0_23] : memref<1x1xf32, #tpu.memory_space<vmem>>, vector<1x1xf32>
      %cst_24 = arith.constant 2.000000e+00 : f32
      %36 = vector.broadcast %cst_24 : f32 to vector<1x1xf32>
      %37 = arith.mulf %36, %35 : vector<1x1xf32>
      %cst_25 = arith.constant 9.99999974E-6 : f32
      %38 = vector.broadcast %cst_25 : f32 to vector<1x1xf32>
      %39 = arith.addf %37, %38 : vector<1x1xf32>
      %c0_26 = arith.constant 0 : index
      %c0_27 = arith.constant 0 : index
      %40 = vector.load %arg8[%c0_26, %c0_27] : memref<1x1xf32, #tpu.memory_space<vmem>>, vector<1x1xf32>
      %c0_28 = arith.constant 0 : index
      %c0_29 = arith.constant 0 : index
      %41 = vector.load %arg7[%c0_28, %c0_29] : memref<1x1xf32, #tpu.memory_space<vmem>>, vector<1x1xf32>
      %42 = arith.addf %40, %41 : vector<1x1xf32>
      %cst_30 = arith.constant 9.99999974E-6 : f32
      %43 = vector.broadcast %cst_30 : f32 to vector<1x1xf32>
      %44 = arith.addf %42, %43 : vector<1x1xf32>
      %45 = arith.divf %39, %44 : vector<1x1xf32>
      %cst_31 = arith.constant 1.000000e+00 : f32
      %46 = vector.broadcast %cst_31 : f32 to vector<1x1xf32>
      %47 = arith.subf %46, %45 : vector<1x1xf32>
      %48 = tpu.iota {dimensions = array<i32: 0>} : vector<8x128xi32>
      %49 = tpu.iota {dimensions = array<i32: 1>} : vector<8x128xi32>
      %c0_i32_32 = arith.constant 0 : i32
      %50 = vector.broadcast %c0_i32_32 : i32 to vector<8x128xi32>
      %51 = arith.cmpi eq, %48, %50 : vector<8x128xi32>
      %c0_i32_33 = arith.constant 0 : i32
      %52 = vector.broadcast %c0_i32_33 : i32 to vector<8x128xi32>
      %53 = arith.cmpi eq, %49, %52 : vector<8x128xi32>
      %54 = arith.andi %51, %53 : vector<8x128xi1>
      %cst_34 = arith.constant 0.000000e+00 : f32
      %55 = vector.shape_cast %47 : vector<1x1xf32> to vector<1x1xf32>
      %56 = vector.broadcast %55 : vector<1x1xf32> to vector<8x128xf32>
      %57 = vector.broadcast %cst_34 : f32 to vector<8x128xf32>
      %58 = arith.select %54, %56, %57 : vector<8x128xi1>, vector<8x128xf32>
      %c0_35 = arith.constant 0 : index
      %c0_36 = arith.constant 0 : index
      %59 = vector.load %arg5[%c0_35, %c0_36] : memref<8x128xf32, #tpu.memory_space<vmem>>, vector<8x128xf32>
      tpu.vector_store %arg5[%c0_35, %c0_36], %58 {strides = array<i32>} : memref<8x128xf32, #tpu.memory_space<vmem>>, vector<8x128xf32>,
    } else {
    }
    return
  }
  func.func @transform_0(%arg0: i32, %arg1: i32, %arg2: i32) -> (i32, i32, i32) {
    %c3_i32 = arith.constant 3 : i32
    %0 = arith.muli %arg0, %c3_i32 : i32
    %1 = arith.addi %0, %arg1 : i32
    %c1_i32 = arith.constant 1 : i32
    %2 = arith.addi %1, %c1_i32 : i32
    %c0_i32 = arith.constant 0 : i32
    %c0_i32_0 = arith.constant 0 : i32
    return %2, %arg2, %c0_i32 : i32, i32, i32
  }
  func.func @transform_1(%arg0: i32, %arg1: i32, %arg2: i32) -> (i32, i32, i32) {
    %c3_i32 = arith.constant 3 : i32
    %0 = arith.muli %arg0, %c3_i32 : i32
    %1 = arith.addi %0, %arg1 : i32
    %c1_i32 = arith.constant 1 : i32
    %2 = arith.addi %1, %c1_i32 : i32
    %c0_i32 = arith.constant 0 : i32
    %c0_i32_0 = arith.constant 0 : i32
    return %2, %arg2, %c0_i32 : i32, i32, i32
  }
  func.func @transform_2(%arg0: i32, %arg1: i32, %arg2: i32) -> (i32, i32) {
    %c2_i32 = arith.constant 2 : i32
    %0 = arith.muli %arg0, %c2_i32 : i32
    %1 = arith.addi %0, %arg1 : i32
    %c0_i32 = arith.constant 0 : i32
    %c0_i32_0 = arith.constant 0 : i32
    return %1, %c0_i32 : i32, i32
  }
}

</mosaic_0001>

<llo_original>
// kernel: tpu_custom_call.1
$region0: #{tpu_custom_call.1}
  #allocation0 [shape = 'u32[]', space=smem, size = 0x4, offset = 0x4, fixed_abs, tag = 'smem constant byte address 0x4 - core index']
  #allocation1 [shape = 'u32[72,128]{1,0:T(1,128)}', space=vmem, size = 0x9000, scoped, tag = 'internal scratch']
  #allocation2 [shape = 'f32[1,1]{1,0:T(1,128)}', space=vmem, size = 0x200, scoped, tag = 'scratch operand']
  #allocation3 [shape = 'f32[1,1]{1,0:T(1,128)}', space=vmem, size = 0x200, scoped, tag = 'scratch operand']
  #allocation4 [shape = 'f32[1,1]{1,0:T(1,128)}', space=vmem, size = 0x200, scoped, tag = 'scratch operand']
  %s0 = inlined_call_operand.hbm [shape: f32[6,16,16], index: 0, kind: input, shape index: {}]
  %s1 = inlined_call_operand.hbm [shape: f32[6,16,16], index: 1, kind: input, shape index: {}]
  %s2 = inlined_call_operand.hbm [shape: f32[32,128], index: 2, kind: output, shape index: {}]
  %s3 = sld [smem:[#allocation0]]
  $region57: #{tpu_custom_call.1} parent=0
    _
  %s5 = ssub.s32 1, %s3
  %s6 = scalar_select 0, %s5, %s3
  $region1: #{tpu_custom_call.1} parent=0
    #allocation5 [shape = 'u8[16384]{0}', space=vmem, size = 0x4000, scoped, tag = 'input window, operand 0']
    #allocation6 [shape = 's32[2]{0}', space=sflag, size = 0x8, scoped, tag = 'scoped memory for tpu_custom_call.1']
    #allocation7 [shape = 's32[2]{0}', space=sflag, size = 0x8, scoped, tag = 'scoped memory for tpu_custom_call.1']
    #allocation8 [shape = 'u8[16384]{0}', space=vmem, size = 0x4000, scoped, tag = 'input window, operand 1']
    #allocation9 [shape = 's32[2]{0}', space=sflag, size = 0x8, scoped, tag = 'scoped memory for tpu_custom_call.1']
    #allocation10 [shape = 'u8[8192]{0}', space=vmem, size = 0x2000, scoped, tag = 'output window, operand 0']
    %7 = vsyncpa [#allocation6], 0
    %s8 = scalar_lea.sflag [#allocation6], 1
    %9 = vsyncpa %s8, 0
    %10 = vsyncpa [#allocation9], 0
    %s11 = scalar_lea.sflag [#allocation9], 1
    %12 = vsyncpa %s11, 0
    %13 = vsyncpa [#allocation7], 0
    %s14 = scalar_lea.sflag [#allocation7], 1
    %15 = vsyncpa %s14, 0
    loop: start=0, step=1, limit=6
    $region2: #{tpu_custom_call.1} parent=1 // loop_pre_header
      _
    $region3: #{tpu_custom_call.1} parent=1 // loop_header
      %s17 = sphi 0, %s21
      %p18 = scmp.ge.s32.totalorder %s17, 6
      %s24 = sphi 0, %s43
      %s25 = sphi 0, %s39
      %s26 = sphi 0, %s35
      %s27 = sphi 0, %s24
      %s28 = sphi 0, %s25
      %s29 = sphi 0, %s26
      %s30 = sphi 0, %s27
      %s31 = sphi 0, %s28
      %s32 = sphi 0, %s29
      %s54 = sphi 0, %s56
      %s57 = sphi 0, %s54
      %s58 = sphi 0, %s57
      %s74 = sphi 0, %s58
      %s88 = sphi 0, %s90
      %s91 = sphi 0, %s88
      %s92 = sphi 0, %s91
      %s108 = sphi 0, %s92
      %s118 = sphi 0, %s120
      %s121 = sphi 0, %s118
      %s122 = sphi 0, %s121
      %s138 = sphi 0, %s122
    $region4: #{tpu_custom_call.1} parent=1 // loop_header_branch
      %20 = sbr.rel (%p18) target = $region8
    $region5: #{tpu_custom_call.1} parent=1 // loop_body
      %s22 = ssub.s32 %s17, 1
      %s23 = ssub.s32 %s17, 2
      %s33 = sadd.s32 1, %s26
      %p34 = scmp.ge.s32.totalorder %s33, 1
      %s35 = scalar_select %p34, 0, %s33
      %s36 = sadd.s32 1, %s25
      %s37 = scalar_select %p34, %s36, %s25
      %p38 = scmp.ge.s32.totalorder %s37, 2
      %s39 = scalar_select %p38, 0, %s37
      %s40 = sadd.s32 1, %s24
      %s41 = scalar_select %p38, %s40, %s24
      %p42 = scmp.ge.s32.totalorder %s41, 2
      %s43 = scalar_select %p42, 0, %s41
      %s44 = smul.u32 %s24, 3
      %s45 = sadd.s32 %s44, %s25
      %s46 = sadd.s32 %s45, 1
      %s47 = smul.u32 %s43, 3
      %s48 = sadd.s32 %s47, %s39
      %s49 = sadd.s32 %s48, 1
      %s50 = ssub.s32 %s46, %s49
      %s51 = ssub.s32 %s26, %s35
      %s52 = sor.u32 %s50, %s51
      %p53 = scmp.eq.s32.totalorder %s52, 0
      %s55 = sadd.s32 %s54, 1
      %s56 = scalar_select %p53, %s54, %s55
      %p59 = pneg %p53
      %p60 = scmp.eq.s32.totalorder %s17, 3
      %p61 = por %p59, %p60
      %p62 = scmp.ne.s32.totalorder %s54, %s57
      %p63 = scmp.eq.s32.totalorder %s17, 0
      %p64 = por %p62, %p63
      %p65 = scmp.ne.s32.totalorder %s54, %s57
      %p66 = scmp.eq.s32.totalorder %s22, 3
      %p67 = por %p65, %p66
      %p68 = scmp.ne.s32.totalorder %s57, %s58
      %p69 = scmp.eq.s32.totalorder %s22, 0
      %p70 = por %p68, %p69
      %p71 = scmp.ne.s32.totalorder %s57, %s58
      %p72 = scmp.eq.s32.totalorder %s23, 3
      %p73 = por %p71, %p72
      %p75 = scmp.ne.s32.totalorder %s58, %s74
      %p76 = scmp.eq.s32.totalorder %s23, 0
      %p77 = por %p75, %p76
      %s78 = smul.u32 %s24, 3
      %s79 = sadd.s32 %s78, %s25
      %s80 = sadd.s32 %s79, 1
      %s81 = smul.u32 %s43, 3
      %s82 = sadd.s32 %s81, %s39
      %s83 = sadd.s32 %s82, 1
      %s84 = ssub.s32 %s80, %s83
      %s85 = ssub.s32 %s26, %s35
      %s86 = sor.u32 %s84, %s85
      %p87 = scmp.eq.s32.totalorder %s86, 0
      %s89 = sadd.s32 %s88, 1
      %s90 = scalar_select %p87, %s88, %s89
      %p93 = pneg %p87
      %p94 = scmp.eq.s32.totalorder %s17, 3
      %p95 = por %p93, %p94
      %p96 = scmp.ne.s32.totalorder %s88, %s91
      %p97 = scmp.eq.s32.totalorder %s17, 0
      %p98 = por %p96, %p97
      %p99 = scmp.ne.s32.totalorder %s88, %s91
      %p100 = scmp.eq.s32.totalorder %s22, 3
      %p101 = por %p99, %p100
      %p102 = scmp.ne.s32.totalorder %s91, %s92
      %p103 = scmp.eq.s32.totalorder %s22, 0
      %p104 = por %p102, %p103
      %p105 = scmp.ne.s32.totalorder %s91, %s92
      %p106 = scmp.eq.s32.totalorder %s23, 3
      %p107 = por %p105, %p106
      %p109 = scmp.ne.s32.totalorder %s92, %s108
      %p110 = scmp.eq.s32.totalorder %s23, 0
      %p111 = por %p109, %p110
      %s112 = smul.u32 %s24, 2
      %s113 = sadd.s32 %s112, %s25
      %s114 = smul.u32 %s43, 2
      %s115 = sadd.s32 %s114, %s39
      %s116 = ssub.s32 %s113, %s115
      %p117 = scmp.eq.s32.totalorder %s116, 0
      %s119 = sadd.s32 %s118, 1
      %s120 = scalar_select %p117, %s118, %s119
      %p123 = pneg %p117
      %p124 = scmp.eq.s32.totalorder %s17, 3
      %p125 = por %p123, %p124
      %p126 = scmp.ne.s32.totalorder %s118, %s121
      %p127 = scmp.eq.s32.totalorder %s17, 0
      %p128 = por %p126, %p127
      %p129 = scmp.ne.s32.totalorder %s118, %s121
      %p130 = scmp.eq.s32.totalorder %s22, 3
      %p131 = por %p129, %p130
      %p132 = scmp.ne.s32.totalorder %s121, %s122
      %p133 = scmp.eq.s32.totalorder %s22, 0
      %p134 = por %p132, %p133
      %p135 = scmp.ne.s32.totalorder %s121, %s122
      %p136 = scmp.eq.s32.totalorder %s23, 3
      %p137 = por %p135, %p136
      %p139 = scmp.ne.s32.totalorder %s122, %s138
      %p140 = scmp.eq.s32.totalorder %s23, 0
      %p141 = por %p139, %p140
      %p142 = scmp.le.s32.totalorder 1, %s17
      %p143 = scmp.lt.s32.totalorder %s17, 5
      %p144 = pnand %p142, %p143
      %p145 = pneg %p144
      // Predicated region
      $region9: #{tpu_custom_call.1} parent=5 // pred_check
        _
      $region10: #{tpu_custom_call.1} parent=5 // pred_check_branch
        %147 = sbr.rel (%p144) target = $region12
      $region11: #{tpu_custom_call.1} parent=5 // pred_region
        %s148 = ssub.s32 %s17, 1
      $region12: #{tpu_custom_call.1} parent=5 // pred_fallthru
        _
      %p149 = scmp.lt.s32.totalorder %s17, 4
      // Predicated region
      $region13: #{tpu_custom_call.1} parent=5 // pred_check
        %p150 = pneg %p149
      $region14: #{tpu_custom_call.1} parent=5 // pred_check_branch
        %152 = sbr.rel (%p150) target = $region16
      $region15: #{tpu_custom_call.1} parent=5 // pred_region
        // Predicated region
        $region17: #{tpu_custom_call.1} parent=15 // pred_check
          %p153 = pneg %p64
        $region18: #{tpu_custom_call.1} parent=15 // pred_check_branch
          %155 = sbr.rel (%p153) target = $region20
        $region19: #{tpu_custom_call.1} parent=15 // pred_region
          %s156 = sand.u32 %s54, 1
          %s157 = scalar_lea.sflag [#allocation6], %s156
          %s158 = sand.u32 %s54, 1
          %s159 = smul.addr %s158, 16
          %s160 = scalar_lea.vmem [#allocation5], %s159
          %s161 = smul.u32 %s24, 3
          %s162 = sadd.s32 %s161, %s25
          %s163 = sadd.s32 %s162, 1
          %s164 = smul.u32 2, %s26
          %166 = vsyncadd %s157, 0
          %s167 = smul.addr %s163, 2
          %s168 = sadd.s32 %s164, %s167
          %s169 = smul.addr %s168, 8
          %s170 = scalar_lea.hbm %s0, %s169
          %s171 = sshll.u32 %s170, 4
          %s172 = int_to_ptr.hbm [resolvable:$true] %s171
          %s173 = sshll.u32 %s160, 4
          %s174 = int_to_ptr.vmem [resolvable:$true] %s173
          %179 = dma.hbm_to_vmem [thread:$0]  %s172, 256, %s174, %s157, 128, 128, 8
        $region20: #{tpu_custom_call.1} parent=15 // pred_fallthru
          _
        // Predicated region
        $region21: #{tpu_custom_call.1} parent=15 // pred_check
          %p180 = pneg %p98
        $region22: #{tpu_custom_call.1} parent=15 // pred_check_branch
          %182 = sbr.rel (%p180) target = $region24
        $region23: #{tpu_custom_call.1} parent=15 // pred_region
          %s183 = sand.u32 %s88, 1
          %s184 = scalar_lea.sflag [#allocation9], %s183
          %s185 = sand.u32 %s88, 1
          %s186 = smul.addr %s185, 16
          %s187 = scalar_lea.vmem [#allocation8], %s186
          %s188 = smul.u32 %s24, 3
          %s189 = sadd.s32 %s188, %s25
          %s190 = sadd.s32 %s189, 1
          %s191 = smul.u32 2, %s26
          %193 = vsyncadd %s184, 0
          %s194 = smul.addr %s190, 2
          %s195 = sadd.s32 %s191, %s194
          %s196 = smul.addr %s195, 8
          %s197 = scalar_lea.hbm %s1, %s196
          %s198 = sshll.u32 %s197, 4
          %s199 = int_to_ptr.hbm [resolvable:$true] %s198
          %s200 = sshll.u32 %s187, 4
          %s201 = int_to_ptr.vmem [resolvable:$true] %s200
          %206 = dma.hbm_to_vmem [thread:$0]  %s199, 256, %s201, %s184, 128, 128, 8
        $region24: #{tpu_custom_call.1} parent=15 // pred_fallthru
          _
      $region16: #{tpu_custom_call.1} parent=5 // pred_fallthru
        _
      %p207 = scmp.le.s32.totalorder 1, %s17
      %p208 = scmp.lt.s32.totalorder %s17, 5
      %p209 = pnand %p207, %p208
      %p210 = pneg %p209
      // Predicated region
      $region25: #{tpu_custom_call.1} parent=5 // pred_check
        _
      $region26: #{tpu_custom_call.1} parent=5 // pred_check_branch
        %212 = sbr.rel (%p209) target = $region28
      $region27: #{tpu_custom_call.1} parent=5 // pred_region
        %s213 = ssub.s32 %s17, 1
        %s214 = sand.u32 %s57, 1
        %s215 = scalar_lea.sflag [#allocation6], %s214
        %s216 = sand.u32 %s57, 1
        %s217 = smul.addr %s216, 16
        %s218 = scalar_lea.vmem [#allocation5], %s217
        // Predicated region
        $region29: #{tpu_custom_call.1} parent=27 // pred_check
          %p219 = pneg %p70
        $region30: #{tpu_custom_call.1} parent=27 // pred_check_branch
          %221 = sbr.rel (%p219) target = $region32
        $region31: #{tpu_custom_call.1} parent=27 // pred_region
          %223 = dma.done %s215, 256
        $region32: #{tpu_custom_call.1} parent=27 // pred_fallthru
          _
        %s224 = sand.u32 %s91, 1
        %s225 = scalar_lea.sflag [#allocation9], %s224
        %s226 = sand.u32 %s91, 1
        %s227 = smul.addr %s226, 16
        %s228 = scalar_lea.vmem [#allocation8], %s227
        // Predicated region
        $region33: #{tpu_custom_call.1} parent=27 // pred_check
          %p229 = pneg %p104
        $region34: #{tpu_custom_call.1} parent=27 // pred_check_branch
          %231 = sbr.rel (%p229) target = $region36
        $region35: #{tpu_custom_call.1} parent=27 // pred_region
          %233 = dma.done %s225, 256
        $region36: #{tpu_custom_call.1} parent=27 // pred_fallthru
          _
        %s234 = sand.u32 %s57, 1
        %s235 = scalar_lea.sflag [#allocation6], %s234
        %s236 = sand.u32 %s57, 1
        %s237 = smul.addr %s236, 16
        %s238 = scalar_lea.vmem [#allocation5], %s237
        %p239 = pneg %p70
        %p240 = pneg %p67
        %s241 = sand.u32 %s91, 1
        %s242 = scalar_lea.sflag [#allocation9], %s241
        %s243 = sand.u32 %s91, 1
        %s244 = smul.addr %s243, 16
        %s245 = scalar_lea.vmem [#allocation8], %s244
        %p246 = pneg %p104
        %p247 = pneg %p101
        %p248 = pneg %p134
        %p249 = pneg %p131
        %s250 = sand.u32 %s121, 1
        %s251 = scalar_lea.sflag [#allocation7], %s250
        %s252 = sand.u32 %s121, 1
        %s253 = smul.addr %s252, 8
        %s254 = scalar_lea.vmem [#allocation10], %s253
        %s255 = smul.u32 %s27, 3
        %s256 = sadd.s32 %s255, %s28
        %s257 = sadd.s32 %s256, 1
        %s258 = smul.u32 2, %s29
        %s259 = smul.u32 %s27, 3
        %s260 = sadd.s32 %s259, %s28
        %s261 = sadd.s32 %s260, 1
        %s262 = smul.u32 2, %s29
        %s263 = smul.u32 %s27, 2
        %s264 = sadd.s32 %s263, %s28
        %p265 = scmp.eq.s32.totalorder %s29, 0
        // Predicated region
        $region37: #{tpu_custom_call.1} parent=27 // pred_check
          %p266 = pneg %p265
        $region38: #{tpu_custom_call.1} parent=27 // pred_check_branch
          %268 = sbr.rel (%p266) target = $region40
        $region39: #{tpu_custom_call.1} parent=27 // pred_region
          %vm269 = vcmask 0
          %270 = vst.msk [vmem:[#allocation2] sm:$0x1] %vm269, 0.0
          %271 = vst.msk [vmem:[#allocation3] sm:$0x1] %vm269, 0.0
          %272 = vst.msk [vmem:[#allocation4] sm:$0x1] %vm269, 0.0
        $region40: #{tpu_custom_call.1} parent=27 // pred_fallthru
          _
        %v273 = vld [vmem:[%s218] sm:$0xff]
        %v274 = vld [vmem:[%s218 + $0x8] sm:$0xff]
        %v275 = vld [vmem:[%s228] sm:$0xff]
        %v276 = vld [vmem:[%s228 + $0x8] sm:$0xff]
        %v277 = vld [vmem:[#allocation2] sm:$0x1]
        %v278 = vmul.f32 %v273, %v275
        %v279 = vmul.f32 %v274, %v276
        %vm280 = vcmask 130048
        %v281 = vsel %vm280, %v278, 0.0
        %v282 = vsel %vm280, %v279, 0.0
        %v283 = vadd.f32 %v281, %v282
        %284 = vadd.xlane.f32.xlu0 %v283
        %v285 = vpop.xlane.xlu0 %284
        %v286 = vrot.slane %v285, 4
        %v287 = vadd.f32 %v285, %v286
        %v288 = vrot.slane %v287, 2
        %v289 = vadd.f32 %v287, %v288
        %v290 = vrot.slane %v289, 1
        %v291 = vadd.f32 %v289, %v290
        %s292 = vtos %v291
        %v293 = vstv %s292
        %v294 = vadd.f32 %v277, %v293
        %vm295 = vcmask 0
        %296 = vst.msk [vmem:[#allocation2] sm:$0x1] %vm295, %v294
        %v297 = vld [vmem:[#allocation3] sm:$0x1]
        %v298 = vsel %vm280, %v273, 0.0
        %v299 = vsel %vm280, %v274, 0.0
        %v300 = vadd.f32 %v298, %v299
        %301 = vadd.xlane.f32.xlu0 %v300
        %v302 = vpop.xlane.xlu0 %301
        %v303 = vrot.slane %v302, 4
        %v304 = vadd.f32 %v302, %v303
        %v305 = vrot.slane %v304, 2
        %v306 = vadd.f32 %v304, %v305
        %v307 = vrot.slane %v306, 1
        %v308 = vadd.f32 %v306, %v307
        %s309 = vtos %v308
        %v310 = vstv %s309
        %v311 = vadd.f32 %v297, %v310
        %312 = vst.msk [vmem:[#allocation3] sm:$0x1] %vm295, %v311
        %v313 = vld [vmem:[#allocation4] sm:$0x1]
        %v314 = vsel %vm280, %v275, 0.0
        %v315 = vsel %vm280, %v276, 0.0
        %v316 = vadd.f32 %v314, %v315
        %317 = vadd.xlane.f32.xlu0 %v316
        %v318 = vpop.xlane.xlu0 %317
        %v319 = vrot.slane %v318, 4
        %v320 = vadd.f32 %v318, %v319
        %v321 = vrot.slane %v320, 2
        %v322 = vadd.f32 %v320, %v321
        %v323 = vrot.slane %v322, 1
        %v324 = vadd.f32 %v322, %v323
        %s325 = vtos %v324
        %v326 = vstv %s325
        %v327 = vadd.f32 %v313, %v326
        %328 = vst.msk [vmem:[#allocation4] sm:$0x1] %vm295, %v327
        // Predicated region
        $region41: #{tpu_custom_call.1} parent=27 // pred_check
          %p329 = pneg %p265
        $region42: #{tpu_custom_call.1} parent=27 // pred_check_branch
          %331 = sbr.rel (%p329) target = $region44
        $region43: #{tpu_custom_call.1} parent=27 // pred_region
          %v332 = vld [vmem:[#allocation2] sm:$0x1]
          %v333 = vmul.f32 %v332, 2.0
          %v334 = vadd.f32 %v333, 1e-05
          %v335 = vld [vmem:[#allocation4] sm:$0x1]
          %v336 = vld [vmem:[#allocation3] sm:$0x1]
          %v337 = vadd.f32 %v335, %v336
          %v338 = vadd.f32 %v337, 1e-05
          %v339 = vrcp.pop %v338
          %v340 = vmul.f32 %v338, %v339
          %v341 = vsub.f32 1.0, %v340
          %v342 = vmul.f32 %v339, %v341
          %v343 = vadd.f32 %v339, %v342
          %vm344 = vweird.f32 %v338
          %vm345 = vweird.f32 %v339
          %vm346 = vmor %vm344, %vm345
          %v347 = vsel %vm346, %v339, %v343
          %v348 = vand.u32 2147483647, %v338
          %vm349 = vcmp.eq.f32.partialorder %v348, 8.507059e+37
          %v350 = vand.u32 %v338, 2147483648
          %v351 = vor.u32 1.1754944e-38, %v350
          %v352 = vsel %vm349, %v351, %v347
          %v353 = vmul.f32 %v334, %v352
          %v354 = vsub.f32 1.0, %v353
          %v355 = vlaneseq
          %v356 = vshrl.u32 %v355, 7
          %v357 = vlaneseq
          %v358 = vand.u32 %v357, 127
          %vm359 = vcmp.eq.s32.totalorder %v356, 0
          %vm360 = vcmp.eq.s32.totalorder %v358, 0
          %vm361 = vmand %vm359, %vm360
          %v363 = vperm.slane %v354, 0
          %364 = vset.pattern.permute.xlu0 0
          %365 = vperm.xlu0 %364, %v363
          %v366 = vpop.permute.xlu0 %365
          %v368 = vsel %vm361, %v366, 0.0
          %369 = vst [vmem:[%s254] sm:$0xff] %v368
        $region44: #{tpu_custom_call.1} parent=27 // pred_fallthru
          _
        %s370 = sand.u32 %s121, 1
        %s371 = scalar_lea.sflag [#allocation7], %s370
        %s372 = sand.u32 %s121, 1
        %s373 = smul.addr %s372, 8
        %s374 = scalar_lea.vmem [#allocation10], %s373
        // Predicated region
        $region45: #{tpu_custom_call.1} parent=27 // pred_check
          %p375 = pneg %p131
        $region46: #{tpu_custom_call.1} parent=27 // pred_check_branch
          %377 = sbr.rel (%p375) target = $region48
        $region47: #{tpu_custom_call.1} parent=27 // pred_region
          %s378 = smul.u32 %s27, 2
          %s379 = sadd.s32 %s378, %s28
          %381 = vsyncadd %s371, 0
          %s382 = smul.addr %s379, 8
          %s383 = scalar_lea.hbm %s2, %s382
          %s385 = sshll.u32 %s374, 4
          %s386 = int_to_ptr.vmem [resolvable:$true] %s385
          %s387 = sshll.u32 %s383, 4
          %s388 = int_to_ptr.hbm [resolvable:$true] %s387
          %390 = dma.vmem_to_hbm [thread:$0]  %s386, 128, %s388, %s371
        $region48: #{tpu_custom_call.1} parent=27 // pred_fallthru
          _
      $region28: #{tpu_custom_call.1} parent=5 // pred_fallthru
        _
      %p391 = scmp.le.s32.totalorder 2, %s17
      // Predicated region
      $region49: #{tpu_custom_call.1} parent=5 // pred_check
        %p392 = pneg %p391
      $region50: #{tpu_custom_call.1} parent=5 // pred_check_branch
        %394 = sbr.rel (%p392) target = $region52
      $region51: #{tpu_custom_call.1} parent=5 // pred_region
        %s395 = ssub.s32 %s17, 2
        // Predicated region
        $region53: #{tpu_custom_call.1} parent=51 // pred_check
          %p396 = pneg %p137
        $region54: #{tpu_custom_call.1} parent=51 // pred_check_branch
          %398 = sbr.rel (%p396) target = $region56
        $region55: #{tpu_custom_call.1} parent=51 // pred_region
          %s399 = sand.u32 %s122, 1
          %s400 = scalar_lea.sflag [#allocation7], %s399
          %s401 = sand.u32 %s122, 1
          %s402 = smul.addr %s401, 8
          %s403 = scalar_lea.vmem [#allocation10], %s402
          %405 = dma.done %s400, 128
        $region56: #{tpu_custom_call.1} parent=51 // pred_fallthru
          _
      $region52: #{tpu_custom_call.1} parent=5 // pred_fallthru
        _
    $region6: #{tpu_custom_call.1} parent=1 // loop_footer
      %s21 = sadd.s32 1, %s17
    $region7: #{tpu_custom_call.1} parent=1 // loop_footer_branch
      %16 = sbr.rel target = $region3
    $region8: #{tpu_custom_call.1} parent=1 // loop_exit
      _
    %406 = vsyncpa [#allocation6], 1
    %s407 = scalar_lea.sflag [#allocation6], 1
    %408 = vsyncpa %s407, 1
    %409 = vsyncpa [#allocation9], 1
    %s410 = scalar_lea.sflag [#allocation9], 1
    %411 = vsyncpa %s410, 1
    %412 = vsyncpa [#allocation7], 1
    %s413 = scalar_lea.sflag [#allocation7], 1
    %414 = vsyncpa %s413, 1

</llo_original>
